<compile_context>
chip_gen: v5e
topology: v5e:2x2
jax: 0.10.0
libtpu: 0.0.40
codegen_flags: <defaults>
</compile_context>

<pallas_src>
import jax
import jax.numpy as jnp
from jax.experimental import pallas as pl
from jax.experimental.pallas import tpu as pltpu


def _round_up(x, m):
    return ((x + m - 1) // m) * m


def _mlp_softmax_kernel(x_ref, w1_ref, b1_ref, w2_ref, b2_ref, o_ref):
    # x: (TB, D_in), w1: (D_in, H), b1: (1, H), w2: (H, D_out), b2: (1, D_out)
    x = x_ref[...]

    # Linear 1 (MXU, f32 accumulation) + bias + ReLU
    h = jnp.dot(x, w1_ref[...], preferred_element_type=jnp.float32) + b1_ref[...]
    h = jnp.maximum(h, 0.0)

    # Linear 2 (MXU, f32 accumulation) + bias
    logits = (
        jnp.dot(h.astype(w2_ref.dtype), w2_ref[...],
                preferred_element_type=jnp.float32)
        + b2_ref[...]
    )

    # Softmax over dim=1 (last axis), numerically stable.
    # Exact divide so every row sums to 1 to f32 precision (approx reciprocal was not
    # accurate enough for downstream normalization checks).
    m = jnp.max(logits, axis=-1, keepdims=True)
    e = jnp.exp(logits - m)
    denom = jnp.sum(e, axis=-1, keepdims=True)
    o_ref[...] = (e / denom).astype(o_ref.dtype)


def _cost_estimate(B, D_in, H, D_out, bytes_per_elem):
    flops = 2 * B * (D_in * H + H * D_out) + 4 * B * (H + D_out)
    transcendentals = B * (D_out + 1)  # exp per logit + one divide per row
    bytes_accessed = (
        bytes_per_elem * (B * D_in + D_in * H + H * D_out)  # x, w1, w2
        + 4 * (H + D_out)                                    # biases (f32)
        + 4 * B * D_out                                      # output (f32)
    )
    return pl.CostEstimate(
        flops=int(flops),
        transcendentals=int(transcendentals),
        bytes_accessed=int(bytes_accessed),
    )


def _call_single_block(x, w1, b1, w2, b2, cost):
    """Small/medium-batch path: no grid at all, everything VMEM-resident."""
    B = x.shape[0]
    D_out = w2.shape[1]
    vmem = pl.BlockSpec(memory_space=pltpu.MemorySpace.VMEM)
    return pl.pallas_call(
        _mlp_softmax_kernel,
        out_shape=jax.ShapeDtypeStruct((B, D_out), jnp.float32),
        in_specs=[vmem, vmem, vmem, vmem, vmem],
        out_specs=vmem,
        cost_estimate=cost,
    )(x, w1, b1, w2, b2)


def _call_batch_tiled(x, w1, b1, w2, b2, tb, cost):
    """Large-batch path: tile the batch axis; weights stay VMEM-resident across steps.

    No padding copy of x: the grid is cdiv(B, tb) and the ragged last block (if any) is
    handled by Pallas itself. Rows are fully independent through the MLP + per-row
    softmax, so junk in padded rows never affects valid rows, and out-of-bounds rows of
    the final output block are simply not written back.
    """
    B, D_in = x.shape
    H = w1.shape[1]
    D_out = w2.shape[1]

    grid = pl.cdiv(B, tb)

    # Rough per-step VMEM footprint (x tile is lane-padded to 128 lanes; double-buffered
    # in/out tiles + f32 intermediates). Only set an explicit limit for big tiles so the
    # default scoped-VMEM limit never silently constrains us; 48 MiB is safe on every
    # generation including v7x (64 MiB physical per TC).
    vmem_limit = (48 * 1024 * 1024) if tb >= 4096 else None

    out = pl.pallas_call(
        _mlp_softmax_kernel,
        out_shape=jax.ShapeDtypeStruct((B, D_out), jnp.float32),
        grid_spec=pl.GridSpec(
            grid=(grid,),
            in_specs=[
                pl.BlockSpec((tb, D_in), lambda i: (i, 0)),   # x: tiled over batch
                pl.BlockSpec((D_in, H), lambda i: (0, 0)),    # w1: resident
                pl.BlockSpec((1, H), lambda i: (0, 0)),       # b1: resident
                pl.BlockSpec((H, D_out), lambda i: (0, 0)),   # w2: resident
                pl.BlockSpec((1, D_out), lambda i: (0, 0)),   # b2: resident
            ],
            out_specs=pl.BlockSpec((tb, D_out), lambda i: (i, 0)),
        ),
        compiler_params=pltpu.CompilerParams(
            # Batch tiles are independent -> shard across TCs on v7x megacore.
            dimension_semantics=("parallel",),
            vmem_limit_bytes=vmem_limit,
        ),
        cost_estimate=cost,
    )(x, w1, b1, w2, b2)
    return out


def geometric_classifier(x, w1, b1, w2, b2, *, batch_tile=4096, use_bf16=True):
    """Forward pass of GeometricClassifier.

    x: (B, D_in); w1: (D_in, H); b1: (H,); w2: (H, D_out); b2: (D_out,)
    Returns softmax probabilities, shape (B, D_out), f32 (rows sum to 1 to f32 precision).
    """
    B, D_in = x.shape
    H = w1.shape[1]
    D_out = w2.shape[1]

    # Biases as 2-D f32 rows so they broadcast over the batch inside the kernel.
    b1_2d = b1.reshape(1, H).astype(jnp.float32)
    b2_2d = b2.reshape(1, D_out).astype(jnp.float32)

    if use_bf16:
        # Halve the B-scaling HBM read (x) and use the native bf16 MXU path on all
        # generations (v5e has no single-pass f32 matmul). Accumulation stays f32.
        x = x.astype(jnp.bfloat16)
        w1 = w1.astype(jnp.bfloat16)
        w2 = w2.astype(jnp.bfloat16)
        bytes_per_elem = 2
    else:
        x = x.astype(jnp.float32)
        w1 = w1.astype(jnp.float32)
        w2 = w2.astype(jnp.float32)
        bytes_per_elem = 4

    cost = _cost_estimate(B, D_in, H, D_out, bytes_per_elem)

    if B <= batch_tile:
        return _call_single_block(x, w1, b1_2d, w2, b2_2d, cost)

    # Ensure at least 2 grid steps (v7x megacore uses both TCs) and sublane-aligned tiles.
    tb = min(int(batch_tile), _round_up(pl.cdiv(B, 2), 8))
    tb = max(tb, 8)
    return _call_batch_tiled(x, w1, b1_2d, w2, b2_2d, tb, cost)


def init_params(key, input_dim, hidden_dim, output_dim):
    # Deterministic init mimicking nn.Linear's uniform(-1/sqrt(fan_in), 1/sqrt(fan_in)).
    k1, k2, k3, k4 = jax.random.split(key, 4)
    bound1 = 1.0 / (input_dim ** 0.5)
    bound2 = 1.0 / (hidden_dim ** 0.5)
    w1 = jax.random.uniform(k1, (input_dim, hidden_dim), jnp.float32, -bound1, bound1)
    b1 = jax.random.uniform(k2, (hidden_dim,), jnp.float32, -bound1, bound1)
    w2 = jax.random.uniform(k3, (hidden_dim, output_dim), jnp.float32, -bound2, bound2)
    b2 = jax.random.uniform(k4, (output_dim,), jnp.float32, -bound2, bound2)
    return w1, b1, w2, b2


def _reference(x, w1, b1, w2, b2, use_bf16=True):
    """Pure-JAX reference with the same dtype treatment as the kernel."""
    if use_bf16:
        x = x.astype(jnp.bfloat16).astype(jnp.float32)
        w1 = w1.astype(jnp.bfloat16).astype(jnp.float32)
        w2 = w2.astype(jnp.bfloat16).astype(jnp.float32)
    h = jnp.maximum(x @ w1 + b1.astype(jnp.float32), 0.0)
    logits = h @ w2 + b2.astype(jnp.float32)
    return jax.nn.softmax(logits, axis=1)


if __name__ == "__main__":
    INPUT_DIM = 32
    HIDDEN = 128     # fixed by the module definition
    OUTPUT_DIM = 16

    key = jax.random.PRNGKey(0)
    kx, kp, kx2 = jax.random.split(key, 3)
    w1, b1, w2, b2 = init_params(kp, INPUT_DIM, HIDDEN, OUTPUT_DIM)

    # --- Small-batch path (no grid, fully VMEM-resident) ---
    BATCH = 8
    x = jax.random.normal(kx, (BATCH, INPUT_DIM), jnp.float32)
    out = jax.block_until_ready(geometric_classifier(x, w1, b1, w2, b2))
    ref = _reference(x, w1, b1, w2, b2, use_bf16=True)
    assert out.shape == (BATCH, OUTPUT_DIM)
    assert bool(jnp.allclose(out, ref, atol=2e-3, rtol=2e-3))
    assert bool(jnp.allclose(jnp.sum(out, axis=1), 1.0, atol=1e-5))

    # --- Batch-tiled path (grid over batch, weights resident, ragged last tile, no pad) ---
    BATCH_BIG = 600   # not a multiple of the tile -> exercises the ragged final block
    x_big = jax.random.normal(kx2, (BATCH_BIG, INPUT_DIM), jnp.float32)
    out_big = jax.block_until_ready(
        geometric_classifier(x_big, w1, b1, w2, b2, batch_tile=256)
    )
    ref_big = _reference(x_big, w1, b1, w2, b2, use_bf16=True)
    assert out_big.shape == (BATCH_BIG, OUTPUT_DIM)
    assert bool(jnp.allclose(out_big, ref_big, atol=2e-3, rtol=2e-3))
    assert bool(jnp.allclose(jnp.sum(out_big, axis=1), 1.0, atol=1e-5))

    print("KERNEL_OK")
</pallas_src>

<mosaic_0001>
module attributes {stable_mosaic.version = 11 : i64} {
  func.func @_mlp_softmax_kernel(%arg0: memref<8x32xbf16, #tpu.memory_space<vmem>>, %arg1: memref<32x128xbf16, #tpu.memory_space<vmem>>, %arg2: memref<1x128xf32, #tpu.memory_space<vmem>>, %arg3: memref<128x16xbf16, #tpu.memory_space<vmem>>, %arg4: memref<1x16xf32, #tpu.memory_space<vmem>>, %arg5: memref<8x16xf32, #tpu.memory_space<vmem>>) attributes {dimension_semantics = [], scalar_prefetch = 0 : i64, scratch_operands = 0 : i64, tpu.core_type = #tpu.core_type<tc>} {
    %c0 = arith.constant 0 : index
    %c0_0 = arith.constant 0 : index
    %0 = vector.load %arg0[%c0, %c0_0] : memref<8x32xbf16, #tpu.memory_space<vmem>>, vector<8x32xbf16>
    %c0_1 = arith.constant 0 : index
    %c0_2 = arith.constant 0 : index
    %1 = vector.load %arg1[%c0_1, %c0_2] : memref<32x128xbf16, #tpu.memory_space<vmem>>, vector<32x128xbf16>
    %cst = arith.constant dense<0.000000e+00> : vector<8x128xf32>
    %2 = tpu.matmul %0, %1, %cst {dimension_numbers = #tpu.dot_dimension_numbers<[1], [0], [0], [1], [0, 0, 1, 1], [], []>} : vector<8x32xbf16>, vector<32x128xbf16>, vector<8x128xf32> -> vector<8x128xf32>
    %c0_3 = arith.constant 0 : index
    %c0_4 = arith.constant 0 : index
    %3 = vector.load %arg2[%c0_3, %c0_4] : memref<1x128xf32, #tpu.memory_space<vmem>>, vector<1x128xf32>
    %4 = vector.broadcast %3 : vector<1x128xf32> to vector<8x128xf32>
    %5 = arith.addf %2, %4 : vector<8x128xf32>
    %cst_5 = arith.constant 0.000000e+00 : f32
    %6 = vector.broadcast %cst_5 : f32 to vector<8x128xf32>
    %7 = arith.maximumf %5, %6 : vector<8x128xf32>
    %8 = arith.truncf %7 : vector<8x128xf32> to vector<8x128xbf16>
    %c0_6 = arith.constant 0 : index
    %c0_7 = arith.constant 0 : index
    %9 = vector.load %arg3[%c0_6, %c0_7] : memref<128x16xbf16, #tpu.memory_space<vmem>>, vector<128x16xbf16>
    %cst_8 = arith.constant dense<0.000000e+00> : vector<8x16xf32>
    %10 = tpu.matmul %8, %9, %cst_8 {dimension_numbers = #tpu.dot_dimension_numbers<[1], [0], [0], [1], [0, 0, 1, 1], [], []>} : vector<8x128xbf16>, vector<128x16xbf16>, vector<8x16xf32> -> vector<8x16xf32>
    %c0_9 = arith.constant 0 : index
    %c0_10 = arith.constant 0 : index
    %11 = vector.load %arg4[%c0_9, %c0_10] : memref<1x16xf32, #tpu.memory_space<vmem>>, vector<1x16xf32>
    %12 = vector.broadcast %11 : vector<1x16xf32> to vector<8x16xf32>
    %13 = arith.addf %10, %12 : vector<8x16xf32>
    %cst_11 = arith.constant dense<0xFF800000> : vector<8xf32>
    %14 = vector.multi_reduction <maximumf>, %13, %cst_11 [1] : vector<8x16xf32> to vector<8xf32>
    %15 = vector.shape_cast %14 : vector<8xf32> to vector<8x1xf32>
    %16 = vector.broadcast %15 : vector<8x1xf32> to vector<8x16xf32>
    %17 = arith.subf %13, %16 : vector<8x16xf32>
    %18 = math.exp %17 : vector<8x16xf32>
    %cst_12 = arith.constant dense<0.000000e+00> : vector<8xf32>
    %19 = vector.multi_reduction <add>, %18, %cst_12 [1] : vector<8x16xf32> to vector<8xf32>
    %20 = vector.shape_cast %19 : vector<8xf32> to vector<8x1xf32>
    %21 = vector.broadcast %20 : vector<8x1xf32> to vector<8x16xf32>
    %22 = arith.divf %18, %21 : vector<8x16xf32>
    %c0_13 = arith.constant 0 : index
    %c0_14 = arith.constant 0 : index
    %23 = vector.load %arg5[%c0_13, %c0_14] : memref<8x16xf32, #tpu.memory_space<vmem>>, vector<8x16xf32>
    tpu.vector_store %arg5[%c0_13, %c0_14], %22 {strides = array<i32>} : memref<8x16xf32, #tpu.memory_space<vmem>>, vector<8x16xf32>,
    return
  }
}

</mosaic_0001>

<llo_original>
// kernel: tpu_custom_call.1
$region0: #{tpu_custom_call.1}
  #allocation0 [shape = 'u32[]', space=smem, size = 0x4, offset = 0x4, fixed_abs, tag = 'smem constant byte address 0x4 - core index']
  #allocation1 [shape = 'u32[72,128]{1,0:T(1,128)}', space=vmem, size = 0x9000, scoped, tag = 'internal scratch']
  %s0 = inlined_call_operand.vmem [shape: bf16[8,32], index: 0, kind: input, shape index: {}]
  %s1 = inlined_call_operand.vmem [shape: bf16[32,128], index: 1, kind: input, shape index: {}]
  %s2 = inlined_call_operand.vmem [shape: f32[1,128], index: 2, kind: input, shape index: {}]
  %s3 = inlined_call_operand.vmem [shape: bf16[128,16], index: 3, kind: input, shape index: {}]
  %s4 = inlined_call_operand.vmem [shape: f32[1,16], index: 4, kind: input, shape index: {}]
  %s5 = inlined_call_operand.hbm [shape: f32[8,16], index: 5, kind: output, shape index: {}]
  %s6 = sld [smem:[#allocation0]]
  $region30: #{tpu_custom_call.1} parent=0
    _
  %s8 = ssub.s32 1, %s6
  %s9 = scalar_select 0, %s8, %s6
  $region1: #{tpu_custom_call.1} parent=0
    #allocation2 [shape = 'u8[4096]{0}', space=vmem, size = 0x1000, scoped, tag = 'output window, operand 0, single buffered']
    #allocation3 [shape = 's32[1]{0}', space=sflag, size = 0x4, scoped, tag = 'scoped memory for tpu_custom_call.1']
    %10 = vsyncpa [#allocation3], 0
    // Predicated region
    $region2: #{tpu_custom_call.1} parent=1 // pred_check
      _
    $region3: #{tpu_custom_call.1} parent=1 // pred_check_branch
      %12 = sbr.rel (0) target = $region5
    $region4: #{tpu_custom_call.1} parent=1 // pred_region
      _
    $region5: #{tpu_custom_call.1} parent=1 // pred_fallthru
      _
    // Predicated region
    $region6: #{tpu_custom_call.1} parent=1 // pred_check
      _
    $region7: #{tpu_custom_call.1} parent=1 // pred_check_branch
      %14 = sbr.rel (0) target = $region9
    $region8: #{tpu_custom_call.1} parent=1 // pred_region
      _
    $region9: #{tpu_custom_call.1} parent=1 // pred_fallthru
      _
    // Predicated region
    $region10: #{tpu_custom_call.1} parent=1 // pred_check
      _
    $region11: #{tpu_custom_call.1} parent=1 // pred_check_branch
      %16 = sbr.rel (0) target = $region13
    $region12: #{tpu_custom_call.1} parent=1 // pred_region
      _
    $region13: #{tpu_custom_call.1} parent=1 // pred_fallthru
      _
    // Predicated region
    $region14: #{tpu_custom_call.1} parent=1 // pred_check
      _
    $region15: #{tpu_custom_call.1} parent=1 // pred_check_branch
      %18 = sbr.rel (0) target = $region17
    $region16: #{tpu_custom_call.1} parent=1 // pred_region
      _
    $region17: #{tpu_custom_call.1} parent=1 // pred_fallthru
      _
    // Predicated region
    $region18: #{tpu_custom_call.1} parent=1 // pred_check
      _
    $region19: #{tpu_custom_call.1} parent=1 // pred_check_branch
      %20 = sbr.rel (0) target = $region21
    $region20: #{tpu_custom_call.1} parent=1 // pred_region
      _
    $region21: #{tpu_custom_call.1} parent=1 // pred_fallthru
      _
    %v22 = vld [vmem:[%s0] sm:$0xf]
    %v23 = vld [vmem:[%s1] sm:$0xf]
    %v24 = vld [vmem:[%s1 + $0x4] sm:$0xf]
    %v25 = vld [vmem:[%s1 + $0x8] sm:$0xf]
    %v26 = vld [vmem:[%s1 + $0xc] sm:$0xf]
    %v27 = vld [vmem:[%s2] sm:$0x1]
    %v29 = vperm.slane %v27, 0
    %v35 = vunpack.c.l.b16 %v23
    %v36 = vunpack.c.l.b16 %v24
    %v37 = vunpack.c.l.b16 %v25
    %v38 = vunpack.c.l.b16 %v26
    %v39 = vpack.c.b16 %v36, %v35
    %v40 = vpack.c.b16 %v38, %v37
    %vm43 = vcmask 261120
    %v45 = vsel %vm43, %v22, 0
    %47 = vmatpush.bf16.msra.mxu0 0
    %48 = vmatpush.bf16.msra.mxu0 0
    %49 = vmatpush.bf16.msra.mxu0 0
    %50 = vmatpush.bf16.msra.mxu0 0
    %51 = vmatpush.bf16.msra.mxu0 0
    %52 = vmatpush.bf16.msra.mxu0 0
    %53 = vmatpush.bf16.msra.mxu0 %v40
    %54 = vmatpush.bf16.msra.mxu0 %v39
    %55 = vmatmul.bf16.gmra.mxu0 %v45
    %v56 = vpop.f32.mrf.mxu0
    %v57 = vadd.f32 %v29, %v56
    %v58 = vpop.f32.mrf.mxu0
    %59 = vdwg.mxu0
    %v60 = vmax.f32 %v57, 0.0
    %v61 = vpack.c.bf16 %v60, %v60
    %v62 = vld [vmem:[%s3] sm:$0xf]
    %v63 = vld [vmem:[%s3 + $0x4] sm:$0xf]
    %v64 = vld [vmem:[%s3 + $0x8] sm:$0xf]
    %v65 = vld [vmem:[%s3 + $0xc] sm:$0xf]
    %v66 = vld [vmem:[%s3 + $0x10] sm:$0xf]
    %v67 = vld [vmem:[%s3 + $0x14] sm:$0xf]
    %v68 = vld [vmem:[%s3 + $0x18] sm:$0xf]
    %v69 = vld [vmem:[%s3 + $0x1c] sm:$0xf]
    %v70 = vld [vmem:[%s3 + $0x20] sm:$0xf]
    %v71 = vld [vmem:[%s3 + $0x24] sm:$0xf]
    %v72 = vld [vmem:[%s3 + $0x28] sm:$0xf]
    %v73 = vld [vmem:[%s3 + $0x2c] sm:$0xf]
    %v74 = vld [vmem:[%s3 + $0x30] sm:$0xf]
    %v75 = vld [vmem:[%s3 + $0x34] sm:$0xf]
    %v76 = vld [vmem:[%s3 + $0x38] sm:$0xf]
    %v77 = vld [vmem:[%s3 + $0x3c] sm:$0xf]
    %v78 = vld [vmem:[%s4] sm:$0x1]
    %v80 = vperm.slane %v78, 0
    %v98 = vunpack.c.l.b16 %v62
    %v99 = vunpack.c.l.b16 %v63
    %v100 = vunpack.c.l.b16 %v64
    %v101 = vunpack.c.l.b16 %v65
    %v102 = vunpack.c.l.b16 %v66
    %v103 = vunpack.c.l.b16 %v67
    %v104 = vunpack.c.l.b16 %v68
    %v105 = vunpack.c.l.b16 %v69
    %v106 = vunpack.c.l.b16 %v70
    %v107 = vunpack.c.l.b16 %v71
    %v108 = vunpack.c.l.b16 %v72
    %v109 = vunpack.c.l.b16 %v73
    %v110 = vunpack.c.l.b16 %v74
    %v111 = vunpack.c.l.b16 %v75
    %v112 = vunpack.c.l.b16 %v76
    %v113 = vunpack.c.l.b16 %v77
    %v114 = vpack.c.b16 %v99, %v98
    %v115 = vpack.c.b16 %v101, %v100
    %v116 = vpack.c.b16 %v103, %v102
    %v117 = vpack.c.b16 %v105, %v104
    %v118 = vpack.c.b16 %v107, %v106
    %v119 = vpack.c.b16 %v109, %v108
    %v120 = vpack.c.b16 %v111, %v110
    %v121 = vpack.c.b16 %v113, %v112
    %130 = vmatpush.bf16.msra.mxu0 %v121
    %131 = vmatpush.bf16.msra.mxu0 %v120
    %132 = vmatpush.bf16.msra.mxu0 %v119
    %133 = vmatpush.bf16.msra.mxu0 %v118
    %134 = vmatpush.bf16.msra.mxu0 %v117
    %135 = vmatpush.bf16.msra.mxu0 %v116
    %136 = vmatpush.bf16.msra.mxu0 %v115
    %137 = vmatpush.bf16.msra.mxu0 %v114
    %138 = vmatmul.bf16.gmra.mxu0 %v61
    %v139 = vpop.f32.mrf.mxu0
    %v140 = vadd.f32 %v80, %v139
    %v141 = vpop.f32.mrf.mxu0
    %142 = vdwg.mxu0
    %vm143 = vcmask 130048
    %v144 = vsel %vm143, %v140, -inf
    %145 = vmax.xlane.f32.xlu0 %v144
    %v146 = vpop.xlane.xlu0 %145
    %v147 = vsub.f32 %v140, %v146
    %v148 = vmul.f32 %v147, 1.442695
    %v149 = vpow.pop %v148
    %v150 = vsel %vm143, %v149, 0.0
    %151 = vadd.xlane.f32.xlu0 %v150
    %v152 = vpop.xlane.xlu0 %151
    %v153 = vrcp.pop %v152
    %v154 = vmul.f32 %v152, %v153
    %v155 = vsub.f32 1.0, %v154
    %v156 = vmul.f32 %v153, %v155
    %v157 = vadd.f32 %v153, %v156
    %vm158 = vweird.f32 %v152
    %vm159 = vweird.f32 %v153
    %vm160 = vmor %vm158, %vm159
    %v161 = vsel %vm160, %v153, %v157
    %v162 = vand.u32 2147483647, %v152
    %vm163 = vcmp.eq.f32.partialorder %v162, 8.507059e+37
    %v164 = vand.u32 %v152, 2147483648
    %v165 = vor.u32 1.1754944e-38, %v164
    %v166 = vsel %vm163, %v165, %v161
    %v167 = vmul.f32 %v149, %v166
    %168 = vst.msk [vmem:[#allocation2] sm:$0xff] %vm143, %v167
    // Predicated region
    $region22: #{tpu_custom_call.1} parent=1 // pred_check
      _
    $region23: #{tpu_custom_call.1} parent=1 // pred_check_branch
      %170 = sbr.rel (0) target = $region25
    $region24: #{tpu_custom_call.1} parent=1 // pred_region
      %172 = vsyncadd [#allocation3], 0
      %s174 = sshll.u32 [#allocation2], 4
      %s175 = int_to_ptr.vmem [resolvable:$true] %s174
      %s176 = sshll.u32 %s5, 4
      %s177 = int_to_ptr.hbm [resolvable:$true] %s176
      %179 = dma.vmem_to_hbm [thread:$0]  %s175, 128, %s177, [#allocation3]
    $region25: #{tpu_custom_call.1} parent=1 // pred_fallthru
      _
    // Predicated region
    $region26: #{tpu_custom_call.1} parent=1 // pred_check
      _
    $region27: #{tpu_custom_call.1} parent=1 // pred_check_branch
      %181 = sbr.rel (0) target = $region29
    $region28: #{tpu_custom_call.1} parent=1 // pred_region
      %183 = dma.done [#allocation3], 128
    $region29: #{tpu_custom_call.1} parent=1 // pred_fallthru
      _
    %184 = vsyncpa [#allocation3], 1

</llo_original>
